<compile_context>
chip_gen: v6e
topology: v6e:2x2x1
jax: 0.10.0
libtpu: 0.0.40
codegen_flags: <defaults>
</compile_context>

<pallas_src>
import functools

import jax
import jax.numpy as jnp
import numpy as np
from jax.experimental import pallas as pl


def _mha_kernel(qx_ref, kx_ref, vx_ref, bias_ref,
                wq_ref, bq_ref, wk_ref, bk_ref, wv_ref, bv_ref,
                wm_ref, bm_ref, o_ref, *, num_heads):
    """Fused multi-head attention over batch-packed activations.

    qx_ref        : (d_model, N) f32, N = B * Lq   (queries, batch packed on the lane axis)
    kx_ref/vx_ref : (d_model, M) f32, M = B * Lk
    bias_ref      : (N, M)       f32 additive score bias (0 intra-batch, -1e30 cross-batch)
    w*_ref        : (d_model, d_model) bf16, head-major permuted (wq pre-scaled by 1/sqrt(hd))
    b*_ref        : (d_model, 1) f32 (bq pre-scaled)
    o_ref         : (d_model, N) f32
    """
    cdt = wq_ref.dtype                           # MXU operand dtype (bfloat16)

    qx = qx_ref[...].astype(cdt)
    kx = kx_ref[...].astype(cdt)
    vx = vx_ref[...].astype(cdt)

    # 1x1-conv projections == dense matmuls over the channel axis (bf16 in, f32 accum).
    qp = jnp.dot(wq_ref[...], qx, preferred_element_type=jnp.float32) + bq_ref[...]
    kp = jnp.dot(wk_ref[...], kx, preferred_element_type=jnp.float32) + bk_ref[...]
    vp = jnp.dot(wv_ref[...], vx, preferred_element_type=jnp.float32) + bv_ref[...]

    d_model, n = qp.shape
    m = kp.shape[1]
    head_dim = d_model // num_heads

    # Head split is a pure sublane-axis reshape (rows are already head-major).
    q3 = qp.reshape(num_heads, head_dim, n).astype(cdt)
    k3 = kp.reshape(num_heads, head_dim, m).astype(cdt)
    v3 = vp.reshape(num_heads, head_dim, m).astype(cdt)

    # scores[h, n, m] = sum_d q[h, d, n] * k[h, d, m]   (1/sqrt(hd) already folded into wq/bq)
    scores = jnp.einsum('hdn,hdm->hnm', q3, k3, preferred_element_type=jnp.float32)
    scores = scores + bias_ref[...][None, :, :]          # mask cross-batch pairs

    # Softmax over m, f32 on VPU/EUP.
    smax = jnp.max(scores, axis=-1, keepdims=True)
    p = jnp.exp(scores - smax)
    denom = jnp.sum(p, axis=-1, keepdims=True)
    prob = p * pl.reciprocal(denom, approx=True)

    # out[h, d, n] = sum_m v[h, d, m] * prob[h, n, m]
    out = jnp.einsum('hdm,hnm->hdn', v3, prob.astype(cdt),
                     preferred_element_type=jnp.float32)
    out = out.reshape(d_model, n).astype(cdt)

    # Merge 1x1 conv (columns of wm were permuted to match the head-major row order).
    merged = jnp.dot(wm_ref[...], out, preferred_element_type=jnp.float32) + bm_ref[...]
    o_ref[...] = merged.astype(o_ref.dtype)


def multi_headed_attention(query, key, value, params, num_heads,
                           compute_dtype=jnp.bfloat16):
    """query/key/value: (B, d_model, L) float32 (NCL). Returns (B, d_model, Lq)."""
    B, d_model, Lq = query.shape
    Lk = key.shape[2]
    assert d_model % num_heads == 0
    head_dim = d_model // num_heads
    N, M = B * Lq, B * Lk

    # ---- one-time parameter prep (static transforms, free at runtime) ------------------
    # Permutation mapping head-major row r = h*head_dim + d -> torch channel c = d*H + h
    # (torch's `.view(B, dim, num_heads, -1)` makes the head index the FAST channel axis).
    perm = jnp.arange(d_model).reshape(head_dim, num_heads).T.reshape(-1)
    scale = 1.0 / (head_dim ** 0.5)              # folded into the query projection

    wq_p = (params["wq"][perm] * scale).astype(compute_dtype)
    wk_p = params["wk"][perm].astype(compute_dtype)
    wv_p = params["wv"][perm].astype(compute_dtype)
    wm_p = params["wm"][:, perm].astype(compute_dtype)
    bq_p = (params["bq"][perm] * scale).reshape(d_model, 1).astype(jnp.float32)
    bk_p = params["bk"][perm].reshape(d_model, 1).astype(jnp.float32)
    bv_p = params["bv"][perm].reshape(d_model, 1).astype(jnp.float32)
    bm_p = params["bm"].reshape(d_model, 1).astype(jnp.float32)

    # ---- activation packing: batch goes into the lane axis -----------------------------
    qx = jnp.transpose(query, (1, 0, 2)).reshape(d_model, N)
    kx = jnp.transpose(key, (1, 0, 2)).reshape(d_model, M)
    vx = jnp.transpose(value, (1, 0, 2)).reshape(d_model, M)

    # Additive score bias: 0 within a batch element, -1e30 across batch elements.
    # (For large B this wastes a factor-of-B score FLOPs; at scale reintroduce a batch
    #  grid axis / flash-style KV tiling instead.)
    qb = jnp.arange(N) // Lq
    kb = jnp.arange(M) // Lk
    attn_bias = jnp.where(qb[:, None] == kb[None, :], 0.0, -1e30).astype(jnp.float32)

    kernel = functools.partial(_mha_kernel, num_heads=num_heads)

    # Grid-less call: the whole (tiny) problem lives in VMEM for one invocation, which
    # removes per-grid-step pipeline overhead and per-batch masked partial-lane DMAs.
    out_flat = pl.pallas_call(
        kernel,
        out_shape=jax.ShapeDtypeStruct((d_model, N), jnp.float32),
    )(qx, kx, vx, attn_bias, wq_p, bq_p, wk_p, bk_p, wv_p, bv_p, wm_p, bm_p)

    # Unpack lanes back to (B, d_model, Lq).
    return jnp.transpose(out_flat.reshape(d_model, B, Lq), (1, 0, 2)).astype(query.dtype)


def _reference(query, key, value, params, num_heads):
    """Pure-JAX (f32) mirror of the PyTorch forward pass (for verification)."""
    B, d_model, _ = query.shape
    dim = d_model // num_heads

    def conv1(x, w, b):  # Conv1d kernel_size=1: (B, C, L) -> (B, C, L)
        return jnp.einsum("oc,bcl->bol", w, x) + b[None, :, None]

    qp = conv1(query, params["wq"], params["bq"]).reshape(B, dim, num_heads, -1)
    kp = conv1(key, params["wk"], params["bk"]).reshape(B, dim, num_heads, -1)
    vp = conv1(value, params["wv"], params["bv"]).reshape(B, dim, num_heads, -1)
    scores = jnp.einsum("bdhn,bdhm->bhnm", qp, kp) / (dim ** 0.5)
    prob = jax.nn.softmax(scores, axis=-1)
    out = jnp.einsum("bhnm,bdhm->bdhn", prob, vp)
    return conv1(out.reshape(B, d_model, -1), params["wm"], params["bm"])


if __name__ == "__main__":
    B, d_model, num_heads, L = 2, 32, 4, 8

    key0 = jax.random.PRNGKey(0)
    keys = jax.random.split(key0, 12)

    # Deterministic synthetic parameters (Conv1d kernel_size=1 -> dense (out, in) weight + bias).
    # NOTE: PyTorch's __init__ deepcopies `merge` into the 3 proj layers (identical init);
    # here each layer gets its own deterministic weights — forward semantics are unchanged.
    params = {
        "wq": 0.1 * jax.random.normal(keys[0], (d_model, d_model), jnp.float32),
        "bq": 0.1 * jax.random.normal(keys[1], (d_model,), jnp.float32),
        "wk": 0.1 * jax.random.normal(keys[2], (d_model, d_model), jnp.float32),
        "bk": 0.1 * jax.random.normal(keys[3], (d_model,), jnp.float32),
        "wv": 0.1 * jax.random.normal(keys[4], (d_model, d_model), jnp.float32),
        "bv": 0.1 * jax.random.normal(keys[5], (d_model,), jnp.float32),
        "wm": 0.1 * jax.random.normal(keys[6], (d_model, d_model), jnp.float32),
        "bm": 0.1 * jax.random.normal(keys[7], (d_model,), jnp.float32),
    }

    query = jax.random.normal(keys[8], (B, d_model, L), jnp.float32)
    key_t = jax.random.normal(keys[9], (B, d_model, L), jnp.float32)
    value = jax.random.normal(keys[10], (B, d_model, L), jnp.float32)

    out = multi_headed_attention(query, key_t, value, params, num_heads)
    out = jax.block_until_ready(out)

    ref = _reference(query, key_t, value, params, num_heads)
    # bf16 MXU operands with f32 accumulation (per perf review) vs. the pure-f32 reference
    # -> tolerance loosened accordingly.
    np.testing.assert_allclose(np.asarray(out), np.asarray(ref), atol=5e-2, rtol=5e-2)

    print("KERNEL_OK")
</pallas_src>

<mosaic_0001>
module attributes {stable_mosaic.version = 11 : i64} {
  func.func @_mha_kernel(%arg0: memref<32x16xf32, #tpu.memory_space<vmem>>, %arg1: memref<32x16xf32, #tpu.memory_space<vmem>>, %arg2: memref<32x16xf32, #tpu.memory_space<vmem>>, %arg3: memref<16x16xf32, #tpu.memory_space<vmem>>, %arg4: memref<32x32xbf16, #tpu.memory_space<vmem>>, %arg5: memref<32x1xf32, #tpu.memory_space<vmem>>, %arg6: memref<32x32xbf16, #tpu.memory_space<vmem>>, %arg7: memref<32x1xf32, #tpu.memory_space<vmem>>, %arg8: memref<32x32xbf16, #tpu.memory_space<vmem>>, %arg9: memref<32x1xf32, #tpu.memory_space<vmem>>, %arg10: memref<32x32xbf16, #tpu.memory_space<vmem>>, %arg11: memref<32x1xf32, #tpu.memory_space<vmem>>, %arg12: memref<32x16xf32, #tpu.memory_space<vmem>>) attributes {dimension_semantics = [], scalar_prefetch = 0 : i64, scratch_operands = 0 : i64, tpu.core_type = #tpu.core_type<tc>} {
    %c0 = arith.constant 0 : index
    %c0_0 = arith.constant 0 : index
    %0 = vector.load %arg0[%c0, %c0_0] : memref<32x16xf32, #tpu.memory_space<vmem>>, vector<32x16xf32>
    %1 = arith.truncf %0 : vector<32x16xf32> to vector<32x16xbf16>
    %c0_1 = arith.constant 0 : index
    %c0_2 = arith.constant 0 : index
    %2 = vector.load %arg1[%c0_1, %c0_2] : memref<32x16xf32, #tpu.memory_space<vmem>>, vector<32x16xf32>
    %3 = arith.truncf %2 : vector<32x16xf32> to vector<32x16xbf16>
    %c0_3 = arith.constant 0 : index
    %c0_4 = arith.constant 0 : index
    %4 = vector.load %arg2[%c0_3, %c0_4] : memref<32x16xf32, #tpu.memory_space<vmem>>, vector<32x16xf32>
    %5 = arith.truncf %4 : vector<32x16xf32> to vector<32x16xbf16>
    %c0_5 = arith.constant 0 : index
    %c0_6 = arith.constant 0 : index
    %6 = vector.load %arg4[%c0_5, %c0_6] : memref<32x32xbf16, #tpu.memory_space<vmem>>, vector<32x32xbf16>
    %cst = arith.constant dense<0.000000e+00> : vector<32x16xf32>
    %7 = tpu.matmul %6, %1, %cst {dimension_numbers = #tpu.dot_dimension_numbers<[1], [0], [0], [1], [0, 0, 1, 1], [], []>} : vector<32x32xbf16>, vector<32x16xbf16>, vector<32x16xf32> -> vector<32x16xf32>
    %c0_7 = arith.constant 0 : index
    %c0_8 = arith.constant 0 : index
    %8 = vector.load %arg5[%c0_7, %c0_8] : memref<32x1xf32, #tpu.memory_space<vmem>>, vector<32x1xf32>
    %9 = vector.broadcast %8 : vector<32x1xf32> to vector<32x16xf32>
    %10 = arith.addf %7, %9 : vector<32x16xf32>
    %c0_9 = arith.constant 0 : index
    %c0_10 = arith.constant 0 : index
    %11 = vector.load %arg6[%c0_9, %c0_10] : memref<32x32xbf16, #tpu.memory_space<vmem>>, vector<32x32xbf16>
    %cst_11 = arith.constant dense<0.000000e+00> : vector<32x16xf32>
    %12 = tpu.matmul %11, %3, %cst_11 {dimension_numbers = #tpu.dot_dimension_numbers<[1], [0], [0], [1], [0, 0, 1, 1], [], []>} : vector<32x32xbf16>, vector<32x16xbf16>, vector<32x16xf32> -> vector<32x16xf32>
    %c0_12 = arith.constant 0 : index
    %c0_13 = arith.constant 0 : index
    %13 = vector.load %arg7[%c0_12, %c0_13] : memref<32x1xf32, #tpu.memory_space<vmem>>, vector<32x1xf32>
    %14 = vector.broadcast %13 : vector<32x1xf32> to vector<32x16xf32>
    %15 = arith.addf %12, %14 : vector<32x16xf32>
    %c0_14 = arith.constant 0 : index
    %c0_15 = arith.constant 0 : index
    %16 = vector.load %arg8[%c0_14, %c0_15] : memref<32x32xbf16, #tpu.memory_space<vmem>>, vector<32x32xbf16>
    %cst_16 = arith.constant dense<0.000000e+00> : vector<32x16xf32>
    %17 = tpu.matmul %16, %5, %cst_16 {dimension_numbers = #tpu.dot_dimension_numbers<[1], [0], [0], [1], [0, 0, 1, 1], [], []>} : vector<32x32xbf16>, vector<32x16xbf16>, vector<32x16xf32> -> vector<32x16xf32>
    %c0_17 = arith.constant 0 : index
    %c0_18 = arith.constant 0 : index
    %18 = vector.load %arg9[%c0_17, %c0_18] : memref<32x1xf32, #tpu.memory_space<vmem>>, vector<32x1xf32>
    %19 = vector.broadcast %18 : vector<32x1xf32> to vector<32x16xf32>
    %20 = arith.addf %17, %19 : vector<32x16xf32>
    %21 = vector.shape_cast %10 : vector<32x16xf32> to vector<4x8x16xf32>
    %22 = arith.truncf %21 : vector<4x8x16xf32> to vector<4x8x16xbf16>
    %23 = vector.shape_cast %15 : vector<32x16xf32> to vector<4x8x16xf32>
    %24 = arith.truncf %23 : vector<4x8x16xf32> to vector<4x8x16xbf16>
    %25 = vector.shape_cast %20 : vector<32x16xf32> to vector<4x8x16xf32>
    %26 = arith.truncf %25 : vector<4x8x16xf32> to vector<4x8x16xbf16>
    "tpu.trace_start"() <{level = 10 : i32, message = "hdn,hdm->hnm"}> : () -> ()
    %cst_19 = arith.constant dense<0.000000e+00> : vector<4x16x16xf32>
    %27 = tpu.matmul %22, %24, %cst_19 {dimension_numbers = #tpu.dot_dimension_numbers<[1], [1], [2], [2], [0, 0, 0, 2, 1, 2], [0], [0]>} : vector<4x8x16xbf16>, vector<4x8x16xbf16>, vector<4x16x16xf32> -> vector<4x16x16xf32>
    "tpu.trace_stop"() : () -> ()
    %c0_20 = arith.constant 0 : index
    %c0_21 = arith.constant 0 : index
    %28 = vector.load %arg3[%c0_20, %c0_21] : memref<16x16xf32, #tpu.memory_space<vmem>>, vector<16x16xf32>
    %29 = vector.shape_cast %28 : vector<16x16xf32> to vector<1x16x16xf32>
    %30 = vector.broadcast %29 : vector<1x16x16xf32> to vector<4x16x16xf32>
    %31 = arith.addf %27, %30 : vector<4x16x16xf32>
    %cst_22 = arith.constant dense<0xFF800000> : vector<4x16xf32>
    %32 = vector.multi_reduction <maximumf>, %31, %cst_22 [2] : vector<4x16x16xf32> to vector<4x16xf32>
    %33 = vector.shape_cast %32 : vector<4x16xf32> to vector<4x16x1xf32>
    %34 = vector.broadcast %33 : vector<4x16x1xf32> to vector<4x16x16xf32>
    %35 = arith.subf %31, %34 : vector<4x16x16xf32>
    %36 = math.exp %35 : vector<4x16x16xf32>
    %cst_23 = arith.constant dense<0.000000e+00> : vector<4x16xf32>
    %37 = vector.multi_reduction <add>, %36, %cst_23 [2] : vector<4x16x16xf32> to vector<4x16xf32>
    %38 = vector.shape_cast %37 : vector<4x16xf32> to vector<4x16x1xf32>
    %39 = tpu.reciprocal %38 {approx = true} : vector<4x16x1xf32> -> vector<4x16x1xf32>
    %40 = vector.broadcast %39 : vector<4x16x1xf32> to vector<4x16x16xf32>
    %41 = arith.mulf %36, %40 : vector<4x16x16xf32>
    %42 = arith.truncf %41 : vector<4x16x16xf32> to vector<4x16x16xbf16>
    "tpu.trace_start"() <{level = 10 : i32, message = "hdm,hnm->hdn"}> : () -> ()
    %cst_24 = arith.constant dense<0.000000e+00> : vector<4x8x16xf32>
    %43 = tpu.matmul %26, %42, %cst_24 {dimension_numbers = #tpu.dot_dimension_numbers<[2], [2], [1], [1], [0, 0, 0, 1, 1, 1], [0], [0]>} : vector<4x8x16xbf16>, vector<4x16x16xbf16>, vector<4x8x16xf32> -> vector<4x8x16xf32>
    "tpu.trace_stop"() : () -> ()
    %44 = vector.shape_cast %43 : vector<4x8x16xf32> to vector<32x16xf32>
    %45 = arith.truncf %44 : vector<32x16xf32> to vector<32x16xbf16>
    %c0_25 = arith.constant 0 : index
    %c0_26 = arith.constant 0 : index
    %46 = vector.load %arg10[%c0_25, %c0_26] : memref<32x32xbf16, #tpu.memory_space<vmem>>, vector<32x32xbf16>
    %cst_27 = arith.constant dense<0.000000e+00> : vector<32x16xf32>
    %47 = tpu.matmul %46, %45, %cst_27 {dimension_numbers = #tpu.dot_dimension_numbers<[1], [0], [0], [1], [0, 0, 1, 1], [], []>} : vector<32x32xbf16>, vector<32x16xbf16>, vector<32x16xf32> -> vector<32x16xf32>
    %c0_28 = arith.constant 0 : index
    %c0_29 = arith.constant 0 : index
    %48 = vector.load %arg11[%c0_28, %c0_29] : memref<32x1xf32, #tpu.memory_space<vmem>>, vector<32x1xf32>
    %49 = vector.broadcast %48 : vector<32x1xf32> to vector<32x16xf32>
    %50 = arith.addf %47, %49 : vector<32x16xf32>
    %c0_30 = arith.constant 0 : index
    %c0_31 = arith.constant 0 : index
    %51 = vector.load %arg12[%c0_30, %c0_31] : memref<32x16xf32, #tpu.memory_space<vmem>>, vector<32x16xf32>
    tpu.vector_store %arg12[%c0_30, %c0_31], %50 {strides = array<i32>} : memref<32x16xf32, #tpu.memory_space<vmem>>, vector<32x16xf32>,
    return
  }
}

</mosaic_0001>

<llo_original>
// kernel: tpu_custom_call.1
$region0: #{tpu_custom_call.1}
  #allocation0 [shape = 'u32[]', space=smem, size = 0x4, offset = 0x4, fixed_abs, tag = 'smem constant byte address 0x4 - core index']
  #allocation1 [shape = 'u32[144,128]{1,0:T(1,128)}', space=vmem, size = 0x12000, scoped, tag = 'internal scratch']
  %s0 = inlined_call_operand.vmem [shape: f32[32,16], index: 0, kind: input, shape index: {}]
  %s1 = inlined_call_operand.vmem [shape: f32[32,16], index: 1, kind: input, shape index: {}]
  %s2 = inlined_call_operand.vmem [shape: f32[32,16], index: 2, kind: input, shape index: {}]
  %s3 = inlined_call_operand.vmem [shape: f32[16,16], index: 3, kind: input, shape index: {}]
  %s4 = inlined_call_operand.vmem [shape: bf16[32,32], index: 4, kind: input, shape index: {}]
  %s5 = inlined_call_operand.vmem [shape: f32[32,1], index: 5, kind: input, shape index: {}]
  %s6 = inlined_call_operand.vmem [shape: bf16[32,32], index: 6, kind: input, shape index: {}]
  %s7 = inlined_call_operand.vmem [shape: f32[32,1], index: 7, kind: input, shape index: {}]
  %s8 = inlined_call_operand.vmem [shape: bf16[32,32], index: 8, kind: input, shape index: {}]
  %s9 = inlined_call_operand.vmem [shape: f32[32,1], index: 9, kind: input, shape index: {}]
  %s10 = inlined_call_operand.vmem [shape: bf16[32,32], index: 10, kind: input, shape index: {}]
  %s11 = inlined_call_operand.vmem [shape: f32[32,1], index: 11, kind: input, shape index: {}]
  %s12 = inlined_call_operand.vmem [shape: f32[32,16], index: 12, kind: output, shape index: {}]
  %s13 = sld [smem:[#allocation0]]
  $region58: #{tpu_custom_call.1} parent=0
    _
  %s15 = ssub.s32 1, %s13
  %s16 = scalar_select 0, %s15, %s13
  // Predicated region
  $region2: #{tpu_custom_call.1} parent=0 // pred_check
    _
  $region3: #{tpu_custom_call.1} parent=0 // pred_check_branch
    %18 = sbr.rel (0) target = $region5
  $region4: #{tpu_custom_call.1} parent=0 // pred_region
    _
  $region5: #{tpu_custom_call.1} parent=0 // pred_fallthru
    _
  // Predicated region
  $region6: #{tpu_custom_call.1} parent=0 // pred_check
    _
  $region7: #{tpu_custom_call.1} parent=0 // pred_check_branch
    %20 = sbr.rel (0) target = $region9
  $region8: #{tpu_custom_call.1} parent=0 // pred_region
    _
  $region9: #{tpu_custom_call.1} parent=0 // pred_fallthru
    _
  // Predicated region
  $region10: #{tpu_custom_call.1} parent=0 // pred_check
    _
  $region11: #{tpu_custom_call.1} parent=0 // pred_check_branch
    %22 = sbr.rel (0) target = $region13
  $region12: #{tpu_custom_call.1} parent=0 // pred_region
    _
  $region13: #{tpu_custom_call.1} parent=0 // pred_fallthru
    _
  // Predicated region
  $region14: #{tpu_custom_call.1} parent=0 // pred_check
    _
  $region15: #{tpu_custom_call.1} parent=0 // pred_check_branch
    %24 = sbr.rel (0) target = $region17
  $region16: #{tpu_custom_call.1} parent=0 // pred_region
    _
  $region17: #{tpu_custom_call.1} parent=0 // pred_fallthru
    _
  // Predicated region
  $region18: #{tpu_custom_call.1} parent=0 // pred_check
    _
  $region19: #{tpu_custom_call.1} parent=0 // pred_check_branch
    %26 = sbr.rel (0) target = $region21
  $region20: #{tpu_custom_call.1} parent=0 // pred_region
    _
  $region21: #{tpu_custom_call.1} parent=0 // pred_fallthru
    _
  // Predicated region
  $region22: #{tpu_custom_call.1} parent=0 // pred_check
    _
  $region23: #{tpu_custom_call.1} parent=0 // pred_check_branch
    %28 = sbr.rel (0) target = $region25
  $region24: #{tpu_custom_call.1} parent=0 // pred_region
    _
  $region25: #{tpu_custom_call.1} parent=0 // pred_fallthru
    _
  // Predicated region
  $region26: #{tpu_custom_call.1} parent=0 // pred_check
    _
  $region27: #{tpu_custom_call.1} parent=0 // pred_check_branch
    %30 = sbr.rel (0) target = $region29
  $region28: #{tpu_custom_call.1} parent=0 // pred_region
    _
  $region29: #{tpu_custom_call.1} parent=0 // pred_fallthru
    _
  // Predicated region
  $region30: #{tpu_custom_call.1} parent=0 // pred_check
    _
  $region31: #{tpu_custom_call.1} parent=0 // pred_check_branch
    %32 = sbr.rel (0) target = $region33
  $region32: #{tpu_custom_call.1} parent=0 // pred_region
    _
  $region33: #{tpu_custom_call.1} parent=0 // pred_fallthru
    _
  // Predicated region
  $region34: #{tpu_custom_call.1} parent=0 // pred_check
    _
  $region35: #{tpu_custom_call.1} parent=0 // pred_check_branch
    %34 = sbr.rel (0) target = $region37
  $region36: #{tpu_custom_call.1} parent=0 // pred_region
    _
  $region37: #{tpu_custom_call.1} parent=0 // pred_fallthru
    _
  // Predicated region
  $region38: #{tpu_custom_call.1} parent=0 // pred_check
    _
  $region39: #{tpu_custom_call.1} parent=0 // pred_check_branch
    %36 = sbr.rel (0) target = $region41
  $region40: #{tpu_custom_call.1} parent=0 // pred_region
    _
  $region41: #{tpu_custom_call.1} parent=0 // pred_fallthru
    _
  // Predicated region
  $region42: #{tpu_custom_call.1} parent=0 // pred_check
    _
  $region43: #{tpu_custom_call.1} parent=0 // pred_check_branch
    %38 = sbr.rel (0) target = $region45
  $region44: #{tpu_custom_call.1} parent=0 // pred_region
    _
  $region45: #{tpu_custom_call.1} parent=0 // pred_fallthru
    _
  // Predicated region
  $region46: #{tpu_custom_call.1} parent=0 // pred_check
    _
  $region47: #{tpu_custom_call.1} parent=0 // pred_check_branch
    %40 = sbr.rel (0) target = $region49
  $region48: #{tpu_custom_call.1} parent=0 // pred_region
    _
  $region49: #{tpu_custom_call.1} parent=0 // pred_fallthru
    _
  %v42 = vld [vmem:[%s0] sm:$0xff]
  %v43 = vld [vmem:[%s0 + $0x8] sm:$0xff]
  %v44 = vld [vmem:[%s0 + $0x10] sm:$0xff]
  %v45 = vld [vmem:[%s0 + $0x18] sm:$0xff]
  %v46 = vpack.c.bf16 %v43, %v42
  %v47 = vpack.c.bf16 %v45, %v44
  %v48 = vld [vmem:[%s1] sm:$0xff]
  %v49 = vld [vmem:[%s1 + $0x8] sm:$0xff]
  %v50 = vld [vmem:[%s1 + $0x10] sm:$0xff]
  %v51 = vld [vmem:[%s1 + $0x18] sm:$0xff]
  %v52 = vpack.c.bf16 %v49, %v48
  %v53 = vpack.c.bf16 %v51, %v50
  %v54 = vld [vmem:[%s2] sm:$0xff]
  %v55 = vld [vmem:[%s2 + $0x8] sm:$0xff]
  %v56 = vld [vmem:[%s2 + $0x10] sm:$0xff]
  %v57 = vld [vmem:[%s2 + $0x18] sm:$0xff]
  %v58 = vpack.c.bf16 %v55, %v54
  %v59 = vpack.c.bf16 %v57, %v56
  %v60 = vld [vmem:[%s4] sm:$0xf]
  %v61 = vld [vmem:[%s4 + $0x4] sm:$0xf]
  %v62 = vld [vmem:[%s4 + $0x8] sm:$0xf]
  %v63 = vld [vmem:[%s4 + $0xc] sm:$0xf]
  %v64 = vld [vmem:[%s5] sm:$0xff]
  %v65 = vld [vmem:[%s5 + $0x8] sm:$0xff]
  %v66 = vld [vmem:[%s5 + $0x10] sm:$0xff]
  %v67 = vld [vmem:[%s5 + $0x18] sm:$0xff]
  %69 = vset.pattern.permute.xlu0 0
  %70 = vperm.xlu0 %69, %v64
  %v71 = vpop.permute.xlu0 %70
  %74 = vset.pattern.permute.xlu0 0
  %75 = vperm.xlu0 %74, %v65
  %v76 = vpop.permute.xlu0 %75
  %79 = vset.pattern.permute.xlu0 0
  %80 = vperm.xlu0 %79, %v66
  %v81 = vpop.permute.xlu0 %80
  %84 = vset.pattern.permute.xlu0 0
  %85 = vperm.xlu0 %84, %v67
  %v86 = vpop.permute.xlu0 %85
  %v92 = vunpack.c.l.b16 %v60
  %v93 = vunpack.c.l.b16 %v61
  %v94 = vunpack.c.l.b16 %v62
  %v95 = vunpack.c.l.b16 %v63
  %v96 = vpack.c.b16 %v93, %v92
  %v97 = vpack.c.b16 %v95, %v94
  %vm98 = vcmask 261120
  %v100 = vsel %vm98, %v96, 0
  %v103 = vsel %vm98, %v97, 0
  %105 = vmatprep.subr.bf16.mxu0 0
  %106 = vmatpush1.bf16.msra.mxu0 0
  %107 = vmatprep.subr.bf16.mxu0 0
  %108 = vmatpush1.bf16.msra.mxu0 0
  %109 = vmatprep.subr.bf16.mxu0 0
  %110 = vmatpush1.bf16.msra.mxu0 0
  %111 = vmatprep.subr.bf16.mxu0 0
  %112 = vmatpush1.bf16.msra.mxu0 0
  %113 = vmatprep.subr.bf16.mxu0 0
  %114 = vmatpush1.bf16.msra.mxu0 0
  %115 = vmatprep.subr.bf16.mxu0 0
  %116 = vmatpush1.bf16.msra.mxu0 0
  %117 = vmatprep.subr.bf16.mxu0 0
  %118 = vmatpush1.bf16.msra.mxu0 %v47
  %119 = vmatprep.subr.bf16.mxu0 0
  %120 = vmatpush1.bf16.msra.mxu0 %v46
  %121 = vmatprep.subr.bf16.mxu0 0
  %122 = vmatpush2.bf16.msra.mxu0 0
  %123 = vmatprep.subr.bf16.mxu0 0
  %124 = vmatpush2.bf16.msra.mxu0 0
  %125 = vmatprep.subr.bf16.mxu0 0
  %126 = vmatpush2.bf16.msra.mxu0 0
  %127 = vmatprep.subr.bf16.mxu0 0
  %128 = vmatpush2.bf16.msra.mxu0 0
  %129 = vmatprep.subr.bf16.mxu0 0
  %130 = vmatpush2.bf16.msra.mxu0 0
  %131 = vmatprep.subr.bf16.mxu0 0
  %132 = vmatpush2.bf16.msra.mxu0 0
  %133 = vmatprep.subr.bf16.mxu0 0
  %134 = vmatpush2.bf16.msra.mxu0 0
  %135 = vmatprep.subr.bf16.mxu0 0
  %136 = vmatpush2.bf16.msra.mxu0 0
  %137 = vmatprep.mubr.bf16.mxu0 0
  %138 = vmatmul.mubr.bf16.gmra.mxu0 %v100
  %v139 = vpop.f32.mrf.mxu0
  %v140 = vadd.f32 %v71, %v139
  %v141 = vpop.f32.mrf.mxu0
  %v142 = vpop.f32.mrf.mxu0
  %v143 = vadd.f32 %v76, %v142
  %v144 = vpop.f32.mrf.mxu0
  %145 = vmatprep.mubr.bf16.mxu0 0
  %146 = vmatmul.mubr.bf16.gmra.mxu0 %v103
  %v147 = vpop.f32.mrf.mxu0
  %v148 = vadd.f32 %v81, %v147
  %v149 = vpop.f32.mrf.mxu0
  %v150 = vpop.f32.mrf.mxu0
  %v151 = vadd.f32 %v86, %v150
  %v152 = vpop.f32.mrf.mxu0
  %153 = vdwg.mxu0
  %v154 = vld [vmem:[%s6] sm:$0xf]
  %v155 = vld [vmem:[%s6 + $0x4] sm:$0xf]
  %v156 = vld [vmem:[%s6 + $0x8] sm:$0xf]
  %v157 = vld [vmem:[%s6 + $0xc] sm:$0xf]
  %v158 = vld [vmem:[%s7] sm:$0xff]
  %v159 = vld [vmem:[%s7 + $0x8] sm:$0xff]
  %v160 = vld [vmem:[%s7 + $0x10] sm:$0xff]
  %v161 = vld [vmem:[%s7 + $0x18] sm:$0xff]
  %163 = vset.pattern.permute.xlu0 0
  %164 = vperm.xlu0 %163, %v158
  %v165 = vpop.permute.xlu0 %164
  %168 = vset.pattern.permute.xlu0 0
  %169 = vperm.xlu0 %168, %v159
  %v170 = vpop.permute.xlu0 %169
  %173 = vset.pattern.permute.xlu0 0
  %174 = vperm.xlu0 %173, %v160
  %v175 = vpop.permute.xlu0 %174
  %178 = vset.pattern.permute.xlu0 0
  %179 = vperm.xlu0 %178, %v161
  %v180 = vpop.permute.xlu0 %179
  %v186 = vunpack.c.l.b16 %v154
  %v187 = vunpack.c.l.b16 %v155
  %v188 = vunpack.c.l.b16 %v156
  %v189 = vunpack.c.l.b16 %v157
  %v190 = vpack.c.b16 %v187, %v186
  %v191 = vpack.c.b16 %v189, %v188
  %v193 = vsel %vm98, %v190, 0
  %v196 = vsel %vm98, %v191, 0
  %198 = vmatprep.subr.bf16.mxu0 0
  %199 = vmatpush1.bf16.msra.mxu0 0
  %200 = vmatprep.subr.bf16.mxu0 0
  %201 = vmatpush1.bf16.msra.mxu0 0
  %202 = vmatprep.subr.bf16.mxu0 0
  %203 = vmatpush1.bf16.msra.mxu0 0
  %204 = vmatprep.subr.bf16.mxu0 0
  %205 = vmatpush1.bf16.msra.mxu0 0
  %206 = vmatprep.subr.bf16.mxu0 0
  %207 = vmatpush1.bf16.msra.mxu0 0
  %208 = vmatprep.subr.bf16.mxu0 0
  %209 = vmatpush1.bf16.msra.mxu0 0
  %210 = vmatprep.subr.bf16.mxu0 0
  %211 = vmatpush1.bf16.msra.mxu0 %v53
  %212 = vmatprep.subr.bf16.mxu0 0
  %213 = vmatpush1.bf16.msra.mxu0 %v52
  %214 = vmatprep.subr.bf16.mxu0 0
  %215 = vmatpush2.bf16.msra.mxu0 0
  %216 = vmatprep.subr.bf16.mxu0 0
  %217 = vmatpush2.bf16.msra.mxu0 0
  %218 = vmatprep.subr.bf16.mxu0 0
  %219 = vmatpush2.bf16.msra.mxu0 0
  %220 = vmatprep.subr.bf16.mxu0 0
  %221 = vmatpush2.bf16.msra.mxu0 0
  %222 = vmatprep.subr.bf16.mxu0 0
  %223 = vmatpush2.bf16.msra.mxu0 0
  %224 = vmatprep.subr.bf16.mxu0 0
  %225 = vmatpush2.bf16.msra.mxu0 0
  %226 = vmatprep.subr.bf16.mxu0 0
  %227 = vmatpush2.bf16.msra.mxu0 0
  %228 = vmatprep.subr.bf16.mxu0 0
  %229 = vmatpush2.bf16.msra.mxu0 0
  %230 = vmatprep.mubr.bf16.mxu0 0
  %231 = vmatmul.mubr.bf16.gmra.mxu0 %v193
  %v232 = vpop.f32.mrf.mxu0
  %v233 = vadd.f32 %v165, %v232
  %v234 = vpop.f32.mrf.mxu0
  %v235 = vpop.f32.mrf.mxu0
  %v236 = vadd.f32 %v170, %v235
  %v237 = vpop.f32.mrf.mxu0
  %238 = vmatprep.mubr.bf16.mxu0 0
  %239 = vmatmul.mubr.bf16.gmra.mxu0 %v196
  %v240 = vpop.f32.mrf.mxu0
  %v241 = vadd.f32 %v175, %v240
  %v242 = vpop.f32.mrf.mxu0
  %v243 = vpop.f32.mrf.mxu0
  %v244 = vadd.f32 %v180, %v243
  %v245 = vpop.f32.mrf.mxu0
  %246 = vdwg.mxu0
  %v247 = vld [vmem:[%s8] sm:$0xf]
  %v248 = vld [vmem:[%s8 + $0x4] sm:$0xf]
  %v249 = vld [vmem:[%s8 + $0x8] sm:$0xf]
  %v250 = vld [vmem:[%s8 + $0xc] sm:$0xf]
  %v251 = vld [vmem:[%s9] sm:$0xff]
  %v252 = vld [vmem:[%s9 + $0x8] sm:$0xff]
  %v253 = vld [vmem:[%s9 + $0x10] sm:$0xff]
  %v254 = vld [vmem:[%s9 + $0x18] sm:$0xff]
  %256 = vset.pattern.permute.xlu0 0
  %257 = vperm.xlu0 %256, %v251
  %v258 = vpop.permute.xlu0 %257
  %261 = vset.pattern.permute.xlu0 0
  %262 = vperm.xlu0 %261, %v252
  %v263 = vpop.permute.xlu0 %262
  %266 = vset.pattern.permute.xlu0 0
  %267 = vperm.xlu0 %266, %v253
  %v268 = vpop.permute.xlu0 %267
  %271 = vset.pattern.permute.xlu0 0
  %272 = vperm.xlu0 %271, %v254
  %v273 = vpop.permute.xlu0 %272
  %v279 = vunpack.c.l.b16 %v247
  %v280 = vunpack.c.l.b16 %v248
  %v281 = vunpack.c.l.b16 %v249
  %v282 = vunpack.c.l.b16 %v250
  %v283 = vpack.c.b16 %v280, %v279
  %v284 = vpack.c.b16 %v282, %v281
  %v286 = vsel %vm98, %v283, 0
  %v289 = vsel %vm98, %v284, 0
  %291 = vmatprep.subr.bf16.mxu0 0
  %292 = vmatpush1.bf16.msra.mxu0 0
  %293 = vmatprep.subr.bf16.mxu0 0
  %294 = vmatpush1.bf16.msra.mxu0 0
  %295 = vmatprep.subr.bf16.mxu0 0
  %296 = vmatpush1.bf16.msra.mxu0 0
  %297 = vmatprep.subr.bf16.mxu0 0
  %298 = vmatpush1.bf16.msra.mxu0 0
  %299 = vmatprep.subr.bf16.mxu0 0
  %300 = vmatpush1.bf16.msra.mxu0 0
  %301 = vmatprep.subr.bf16.mxu0 0
  %302 = vmatpush1.bf16.msra.mxu0 0
  %303 = vmatprep.subr.bf16.mxu0 0
  %304 = vmatpush1.bf16.msra.mxu0 %v59
  %305 = vmatprep.subr.bf16.mxu0 0
  %306 = vmatpush1.bf16.msra.mxu0 %v58
  %307 = vmatprep.subr.bf16.mxu0 0
  %308 = vmatpush2.bf16.msra.mxu0 0
  %309 = vmatprep.subr.bf16.mxu0 0
  %310 = vmatpush2.bf16.msra.mxu0 0
  %311 = vmatprep.subr.bf16.mxu0 0
  %312 = vmatpush2.bf16.msra.mxu0 0
  %313 = vmatprep.subr.bf16.mxu0 0
  %314 = vmatpush2.bf16.msra.mxu0 0
  %315 = vmatprep.subr.bf16.mxu0 0
  %316 = vmatpush2.bf16.msra.mxu0 0
  %317 = vmatprep.subr.bf16.mxu0 0
  %318 = vmatpush2.bf16.msra.mxu0 0
  %319 = vmatprep.subr.bf16.mxu0 0
  %320 = vmatpush2.bf16.msra.mxu0 0
  %321 = vmatprep.subr.bf16.mxu0 0
  %322 = vmatpush2.bf16.msra.mxu0 0
  %323 = vmatprep.mubr.bf16.mxu0 0
  %324 = vmatmul.mubr.bf16.gmra.mxu0 %v286
  %v325 = vpop.f32.mrf.mxu0
  %v326 = vadd.f32 %v258, %v325
  %v327 = vpop.f32.mrf.mxu0
  %v328 = vpop.f32.mrf.mxu0
  %v329 = vadd.f32 %v263, %v328
  %v330 = vpop.f32.mrf.mxu0
  %331 = vmatprep.mubr.bf16.mxu0 0
  %332 = vmatmul.mubr.bf16.gmra.mxu0 %v289
  %v333 = vpop.f32.mrf.mxu0
  %v334 = vadd.f32 %v268, %v333
  %v335 = vpop.f32.mrf.mxu0
  %v336 = vpop.f32.mrf.mxu0
  %v337 = vadd.f32 %v273, %v336
  %v338 = vpop.f32.mrf.mxu0
  %339 = vdwg.mxu0
  %v340 = vpack.c.bf16 %v140, %v140
  %v341 = vpack.c.bf16 %v143, %v143
  %v342 = vpack.c.bf16 %v148, %v148
  %v343 = vpack.c.bf16 %v151, %v151
  %v344 = vpack.c.bf16 %v233, %v233
  %v345 = vpack.c.bf16 %v236, %v236
  %v346 = vpack.c.bf16 %v241, %v241
  %v347 = vpack.c.bf16 %v244, %v244
  %v348 = vpack.c.bf16 %v326, %v326
  %v349 = vpack.c.bf16 %v329, %v329
  %v350 = vpack.c.bf16 %v334, %v334
  %v351 = vpack.c.bf16 %v337, %v337
  %v352 = vld [vmem:[%s3] sm:$0xff]
  %v353 = vld [vmem:[%s3 + $0x8] sm:$0xff]
  %354 = vxpose.xlu0.c.b16.start [1/8] %v340, 128
  %355 = vxpose.xlu0.c.b16.cont [2/8] 0, 128
  %356 = vxpose.xlu0.c.b16.cont [3/8] 0, 128
  %357 = vxpose.xlu0.c.b16.cont [4/8] 0, 128
  %358 = vxpose.xlu0.c.b16.cont [5/8] 0, 128
  %359 = vxpose.xlu0.c.b16.cont [6/8] 0, 128
  %360 = vxpose.xlu0.c.b16.cont [7/8] 0, 128
  %361 = vxpose.xlu0.c.b16.end [8/8] 0, 128
  %v362 = vpop.trf.xlu0
  %v363 = vpop.trf.xlu0
  %v364 = vpop.trf.xlu0
  %v365 = vpop.trf.xlu0
  %v366 = vpop.trf.xlu0
  %v367 = vpop.trf.xlu0
  %v368 = vpop.trf.xlu0
  %v369 = vpop.trf.xlu0
  %vm370 = vcmask 64512
  %v372 = vsel %vm370, %v362, 0
  %vm374 = vcmask 1043456
  %v376 = vsel %vm374, %v344, 0
  %378 = vmatprep.subr.bf16.mxu0 0
  %379 = vmatpush1.bf16.msra.mxu0 0
  %380 = vmatprep.subr.bf16.mxu0 0
  %381 = vmatpush1.bf16.msra.mxu0 0
  %382 = vmatprep.subr.bf16.mxu0 0
  %383 = vmatpush1.bf16.msra.mxu0 0
  %384 = vmatprep.subr.bf16.mxu0 0
  %385 = vmatpush1.bf16.msra.mxu0 0
  %386 = vmatprep.subr.bf16.mxu0 0
  %387 = vmatpush1.bf16.msra.mxu0 0
  %388 = vmatprep.subr.bf16.mxu0 0
  %389 = vmatpush1.bf16.msra.mxu0 0
  %390 = vmatprep.subr.bf16.mxu0 0
  %391 = vmatpush1.bf16.msra.mxu0 0
  %392 = vmatprep.subr.bf16.mxu0 0
  %393 = vmatpush1.bf16.msra.mxu0 %v376
  %394 = vmatprep.subr.bf16.mxu0 0
  %395 = vmatpush2.bf16.msra.mxu0 0
  %396 = vmatprep.subr.bf16.mxu0 0
  %397 = vmatpush2.bf16.msra.mxu0 0
  %398 = vmatprep.subr.bf16.mxu0 0
  %399 = vmatpush2.bf16.msra.mxu0 0
  %400 = vmatprep.subr.bf16.mxu0 0
  %401 = vmatpush2.bf16.msra.mxu0 0
  %402 = vmatprep.subr.bf16.mxu0 0
  %403 = vmatpush2.bf16.msra.mxu0 0
  %404 = vmatprep.subr.bf16.mxu0 0
  %405 = vmatpush2.bf16.msra.mxu0 0
  %406 = vmatprep.subr.bf16.mxu0 0
  %407 = vmatpush2.bf16.msra.mxu0 0
  %408 = vmatprep.subr.bf16.mxu0 0
  %409 = vmatpush2.bf16.msra.mxu0 0
  %410 = vmatprep.mubr.bf16.mxu0 0
  %411 = vmatmul.mubr.bf16.gmra.mxu0 %v372
  %v412 = vpop.f32.mrf.mxu0
  %v413 = vadd.f32 %v352, %v412
  %v414 = vpop.f32.mrf.mxu0
  %v415 = vpop.f32.mrf.mxu0
  %v416 = vadd.f32 %v353, %v415
  %v417 = vpop.f32.mrf.mxu0
  %418 = vdwg.mxu0
  %419 = vxpose.xlu0.c.b16.start [1/8] %v341, 128
  %420 = vxpose.xlu0.c.b16.cont [2/8] 0, 128
  %421 = vxpose.xlu0.c.b16.cont [3/8] 0, 128
  %422 = vxpose.xlu0.c.b16.cont [4/8] 0, 128
  %423 = vxpose.xlu0.c.b16.cont [5/8] 0, 128
  %424 = vxpose.xlu0.c.b16.cont [6/8] 0, 128
  %425 = vxpose.xlu0.c.b16.cont [7/8] 0, 128
  %426 = vxpose.xlu0.c.b16.end [8/8] 0, 128
  %v427 = vpop.trf.xlu0
  %v428 = vpop.trf.xlu0
  %v429 = vpop.trf.xlu0
  %v430 = vpop.trf.xlu0
  %v431 = vpop.trf.xlu0
  %v432 = vpop.trf.xlu0
  %v433 = vpop.trf.xlu0
  %v434 = vpop.trf.xlu0
  %v436 = vsel %vm370, %v427, 0
  %v439 = vsel %vm374, %v345, 0
  %441 = vmatprep.subr.bf16.mxu0 0
  %442 = vmatpush1.bf16.msra.mxu0 0
  %443 = vmatprep.subr.bf16.mxu0 0
  %444 = vmatpush1.bf16.msra.mxu0 0
  %445 = vmatprep.subr.bf16.mxu0 0
  %446 = vmatpush1.bf16.msra.mxu0 0
  %447 = vmatprep.subr.bf16.mxu0 0
  %448 = vmatpush1.bf16.msra.mxu0 0
  %449 = vmatprep.subr.bf16.mxu0 0
  %450 = vmatpush1.bf16.msra.mxu0 0
  %451 = vmatprep.subr.bf16.mxu0 0
  %452 = vmatpush1.bf16.msra.mxu0 0
  %453 = vmatprep.subr.bf16.mxu0 0
  %454 = vmatpush1.bf16.msra.mxu0 0
  %455 = vmatprep.subr.bf16.mxu0 0
  %456 = vmatpush1.bf16.msra.mxu0 %v439
  %457 = vmatprep.subr.bf16.mxu0 0
  %458 = vmatpush2.bf16.msra.mxu0 0
  %459 = vmatprep.subr.bf16.mxu0 0
  %460 = vmatpush2.bf16.msra.mxu0 0
  %461 = vmatprep.subr.bf16.mxu0 0
  %462 = vmatpush2.bf16.msra.mxu0 0
  %463 = vmatprep.subr.bf16.mxu0 0
  %464 = vmatpush2.bf16.msra.mxu0 0
  %465 = vmatprep.subr.bf16.mxu0 0
  %466 = vmatpush2.bf16.msra.mxu0 0
  %467 = vmatprep.subr.bf16.mxu0 0
  %468 = vmatpush2.bf16.msra.mxu0 0
  %469 = vmatprep.subr.bf16.mxu0 0
  %470 = vmatpush2.bf16.msra.mxu0 0
  %471 = vmatprep.subr.bf16.mxu0 0
  %472 = vmatpush2.bf16.msra.mxu0 0
  %473 = vmatprep.mubr.bf16.mxu0 0
  %474 = vmatmul.mubr.bf16.gmra.mxu0 %v436
  %v475 = vpop.f32.mrf.mxu0
  %v476 = vadd.f32 %v352, %v475
  %v477 = vpop.f32.mrf.mxu0
  %v478 = vpop.f32.mrf.mxu0
  %v479 = vadd.f32 %v353, %v478
  %v480 = vpop.f32.mrf.mxu0
  %481 = vdwg.mxu0
  %482 = vxpose.xlu0.c.b16.start [1/8] %v342, 128
  %483 = vxpose.xlu0.c.b16.cont [2/8] 0, 128
  %484 = vxpose.xlu0.c.b16.cont [3/8] 0, 128
  %485 = vxpose.xlu0.c.b16.cont [4/8] 0, 128
  %486 = vxpose.xlu0.c.b16.cont [5/8] 0, 128
  %487 = vxpose.xlu0.c.b16.cont [6/8] 0, 128
  %488 = vxpose.xlu0.c.b16.cont [7/8] 0, 128
  %489 = vxpose.xlu0.c.b16.end [8/8] 0, 128
  %v490 = vpop.trf.xlu0
  %v491 = vpop.trf.xlu0
  %v492 = vpop.trf.xlu0
  %v493 = vpop.trf.xlu0
  %v494 = vpop.trf.xlu0
  %v495 = vpop.trf.xlu0
  %v496 = vpop.trf.xlu0
  %v497 = vpop.trf.xlu0
  %v499 = vsel %vm370, %v490, 0
  %v502 = vsel %vm374, %v346, 0
  %504 = vmatprep.subr.bf16.mxu0 0
  %505 = vmatpush1.bf16.msra.mxu0 0
  %506 = vmatprep.subr.bf16.mxu0 0
  %507 = vmatpush1.bf16.msra.mxu0 0
  %508 = vmatprep.subr.bf16.mxu0 0
  %509 = vmatpush1.bf16.msra.mxu0 0
  %510 = vmatprep.subr.bf16.mxu0 0
  %511 = vmatpush1.bf16.msra.mxu0 0
  %512 = vmatprep.subr.bf16.mxu0 0
  %513 = vmatpush1.bf16.msra.mxu0 0
  %514 = vmatprep.subr.bf16.mxu0 0
  %515 = vmatpush1.bf16.msra.mxu0 0
  %516 = vmatprep.subr.bf16.mxu0 0
  %517 = vmatpush1.bf16.msra.mxu0 0
  %518 = vmatprep.subr.bf16.mxu0 0
  %519 = vmatpush1.bf16.msra.mxu0 %v502
  %520 = vmatprep.subr.bf16.mxu0 0
  %521 = vmatpush2.bf16.msra.mxu0 0
  %522 = vmatprep.subr.bf16.mxu0 0
  %523 = vmatpush2.bf16.msra.mxu0 0
  %524 = vmatprep.subr.bf16.mxu0 0
  %525 = vmatpush2.bf16.msra.mxu0 0
  %526 = vmatprep.subr.bf16.mxu0 0
  %527 = vmatpush2.bf16.msra.mxu0 0
  %528 = vmatprep.subr.bf16.mxu0 0
  %529 = vmatpush2.bf16.msra.mxu0 0
  %530 = vmatprep.subr.bf16.mxu0 0
  %531 = vmatpush2.bf16.msra.mxu0 0
  %532 = vmatprep.subr.bf16.mxu0 0
  %533 = vmatpush2.bf16.msra.mxu0 0
  %534 = vmatprep.subr.bf16.mxu0 0
  %535 = vmatpush2.bf16.msra.mxu0 0
  %536 = vmatprep.mubr.bf16.mxu0 0
  %537 = vmatmul.mubr.bf16.gmra.mxu0 %v499
  %v538 = vpop.f32.mrf.mxu0
  %v539 = vadd.f32 %v352, %v538
  %v540 = vpop.f32.mrf.mxu0
  %v541 = vpop.f32.mrf.mxu0
  %v542 = vadd.f32 %v353, %v541
  %v543 = vpop.f32.mrf.mxu0
  %544 = vdwg.mxu0
  %545 = vxpose.xlu0.c.b16.start [1/8] %v343, 128
  %546 = vxpose.xlu0.c.b16.cont [2/8] 0, 128
  %547 = vxpose.xlu0.c.b16.cont [3/8] 0, 128
  %548 = vxpose.xlu0.c.b16.cont [4/8] 0, 128
  %549 = vxpose.xlu0.c.b16.cont [5/8] 0, 128
  %550 = vxpose.xlu0.c.b16.cont [6/8] 0, 128
  %551 = vxpose.xlu0.c.b16.cont [7/8] 0, 128
  %552 = vxpose.xlu0.c.b16.end [8/8] 0, 128
  %v553 = vpop.trf.xlu0
  %v554 = vpop.trf.xlu0
  %v555 = vpop.trf.xlu0
  %v556 = vpop.trf.xlu0
  %v557 = vpop.trf.xlu0
  %v558 = vpop.trf.xlu0
  %v559 = vpop.trf.xlu0
  %v560 = vpop.trf.xlu0
  %v562 = vsel %vm370, %v553, 0
  %v565 = vsel %vm374, %v347, 0
  %567 = vmatprep.subr.bf16.mxu0 0
  %568 = vmatpush1.bf16.msra.mxu0 0
  %569 = vmatprep.subr.bf16.mxu0 0
  %570 = vmatpush1.bf16.msra.mxu0 0
  %571 = vmatprep.subr.bf16.mxu0 0
  %572 = vmatpush1.bf16.msra.mxu0 0
  %573 = vmatprep.subr.bf16.mxu0 0
  %574 = vmatpush1.bf16.msra.mxu0 0
  %575 = vmatprep.subr.bf16.mxu0 0
  %576 = vmatpush1.bf16.msra.mxu0 0
  %577 = vmatprep.subr.bf16.mxu0 0
  %578 = vmatpush1.bf16.msra.mxu0 0
  %579 = vmatprep.subr.bf16.mxu0 0
  %580 = vmatpush1.bf16.msra.mxu0 0
  %581 = vmatprep.subr.bf16.mxu0 0
  %582 = vmatpush1.bf16.msra.mxu0 %v565
  %583 = vmatprep.subr.bf16.mxu0 0
  %584 = vmatpush2.bf16.msra.mxu0 0
  %585 = vmatprep.subr.bf16.mxu0 0
  %586 = vmatpush2.bf16.msra.mxu0 0
  %587 = vmatprep.subr.bf16.mxu0 0
  %588 = vmatpush2.bf16.msra.mxu0 0
  %589 = vmatprep.subr.bf16.mxu0 0
  %590 = vmatpush2.bf16.msra.mxu0 0
  %591 = vmatprep.subr.bf16.mxu0 0
  %592 = vmatpush2.bf16.msra.mxu0 0
  %593 = vmatprep.subr.bf16.mxu0 0
  %594 = vmatpush2.bf16.msra.mxu0 0
  %595 = vmatprep.subr.bf16.mxu0 0
  %596 = vmatpush2.bf16.msra.mxu0 0
  %597 = vmatprep.subr.bf16.mxu0 0
  %598 = vmatpush2.bf16.msra.mxu0 0
  %599 = vmatprep.mubr.bf16.mxu0 0
  %600 = vmatmul.mubr.bf16.gmra.mxu0 %v562
  %v601 = vpop.f32.mrf.mxu0
  %v602 = vadd.f32 %v352, %v601
  %v603 = vpop.f32.mrf.mxu0
  %v604 = vpop.f32.mrf.mxu0
  %v605 = vadd.f32 %v353, %v604
  %v606 = vpop.f32.mrf.mxu0
  %607 = vdwg.mxu0
  %vm608 = vcmask 130048
  %v609 = vsel %vm608, %v413, -inf
  %610 = vmax.xlane.f32.xlu0 %v609
  %v611 = vpop.xlane.xlu0 %610
  %v612 = vsel %vm608, %v416, -inf
  %613 = vmax.xlane.f32.xlu0 %v612
  %v614 = vpop.xlane.xlu0 %613
  %v615 = vsel %vm608, %v476, -inf
  %616 = vmax.xlane.f32.xlu0 %v615
  %v617 = vpop.xlane.xlu0 %616
  %v618 = vsel %vm608, %v479, -inf
  %619 = vmax.xlane.f32.xlu0 %v618
  %v620 = vpop.xlane.xlu0 %619
  %v621 = vsel %vm608, %v539, -inf
  %622 = vmax.xlane.f32.xlu0 %v621
  %v623 = vpop.xlane.xlu0 %622
  %v624 = vsel %vm608, %v542, -inf
  %625 = vmax.xlane.f32.xlu0 %v624
  %v626 = vpop.xlane.xlu0 %625
  %v627 = vsel %vm608, %v602, -inf
  %628 = vmax.xlane.f32.xlu0 %v627
  %v629 = vpop.xlane.xlu0 %628
  %v630 = vsel %vm608, %v605, -inf
  %631 = vmax.xlane.f32.xlu0 %v630
  %v632 = vpop.xlane.xlu0 %631
  %v633 = vsub.f32 %v413, %v611
  %v634 = vsub.f32 %v416, %v614
  %v635 = vsub.f32 %v476, %v617
  %v636 = vsub.f32 %v479, %v620
  %v637 = vsub.f32 %v539, %v623
  %v638 = vsub.f32 %v542, %v626
  %v639 = vsub.f32 %v602, %v629
  %v640 = vsub.f32 %v605, %v632
  %v641 = vmul.f32 %v633, 1.442695
  %v642 = vpow.pop %v641
  %v643 = vmul.f32 %v634, 1.442695
  %v644 = vpow.pop %v643
  %v645 = vmul.f32 %v635, 1.442695
  %v646 = vpow.pop %v645
  %v647 = vmul.f32 %v636, 1.442695
  %v648 = vpow.pop %v647
  %v649 = vmul.f32 %v637, 1.442695
  %v650 = vpow.pop %v649
  %v651 = vmul.f32 %v638, 1.442695
  %v652 = vpow.pop %v651
  %v653 = vmul.f32 %v639, 1.442695
  %v654 = vpow.pop %v653
  %v655 = vmul.f32 %v640, 1.442695
  %v656 = vpow.pop %v655
  %v657 = vsel %vm608, %v642, 0.0
  %658 = vadd.xlane.f32.xlu0 %v657
  %v659 = vpop.xlane.xlu0 %658
  %v660 = vsel %vm608, %v644, 0.0
  %661 = vadd.xlane.f32.xlu0 %v660
  %v662 = vpop.xlane.xlu0 %661
  %v663 = vsel %vm608, %v646, 0.0
  %664 = vadd.xlane.f32.xlu0 %v663
  %v665 = vpop.xlane.xlu0 %664
  %v666 = vsel %vm608, %v648, 0.0
  %667 = vadd.xlane.f32.xlu0 %v666
  %v668 = vpop.xlane.xlu0 %667
  %v669 = vsel %vm608, %v650, 0.0
  %670 = vadd.xlane.f32.xlu0 %v669
  %v671 = vpop.xlane.xlu0 %670
  %v672 = vsel %vm608, %v652, 0.0
  %673 = vadd.xlane.f32.xlu0 %v672
  %v674 = vpop.xlane.xlu0 %673
  %v675 = vsel %vm608, %v654, 0.0
  %676 = vadd.xlane.f32.xlu0 %v675
  %v677 = vpop.xlane.xlu0 %676
  %v678 = vsel %vm608, %v656, 0.0
  %679 = vadd.xlane.f32.xlu0 %v678
  %v680 = vpop.xlane.xlu0 %679
  %v681 = vrcp.pop %v659
  %v682 = vrcp.pop %v662
  %v683 = vrcp.pop %v665
  %v684 = vrcp.pop %v668
  %v685 = vrcp.pop %v671
  %v686 = vrcp.pop %v674
  %v687 = vrcp.pop %v677
  %v688 = vrcp.pop %v680
  %v689 = vmul.f32 %v642, %v681
  %v690 = vmul.f32 %v644, %v682
  %v691 = vmul.f32 %v646, %v683
  %v692 = vmul.f32 %v648, %v684
  %v693 = vmul.f32 %v650, %v685
  %v694 = vmul.f32 %v652, %v686
  %v695 = vmul.f32 %v654, %v687
  %v696 = vmul.f32 %v656, %v688
  %v697 = vpack.c.bf16 %v690, %v689
  %v698 = vpack.c.bf16 %v692, %v691
  %v699 = vpack.c.bf16 %v694, %v693
  %v700 = vpack.c.bf16 %v696, %v695
  %v702 = vsel %vm608, %v348, 0
  %v705 = vsel %vm608, %v697, 0
  %707 = vmatprep.subr.bf16.mxu0 0
  %708 = vmatpush1.bf16.xpose.msra.mxu0 0
  %709 = vmatprep.subr.bf16.mxu0 0
  %710 = vmatpush1.bf16.xpose.msra.mxu0 0
  %711 = vmatprep.subr.bf16.mxu0 0
  %712 = vmatpush1.bf16.xpose.msra.mxu0 0
  %713 = vmatprep.subr.bf16.mxu0 0
  %714 = vmatpush1.bf16.xpose.msra.mxu0 0
  %715 = vmatprep.subr.bf16.mxu0 0
  %716 = vmatpush1.bf16.xpose.msra.mxu0 0
  %717 = vmatprep.subr.bf16.mxu0 0
  %718 = vmatpush1.bf16.xpose.msra.mxu0 0
  %719 = vmatprep.subr.bf16.mxu0 0
  %720 = vmatpush1.bf16.xpose.msra.mxu0 0
  %721 = vmatprep.subr.bf16.mxu0 0
  %722 = vmatpush1.bf16.xpose.msra.mxu0 %v705
  %723 = vmatprep.subr.bf16.mxu0 0
  %724 = vmatpush2.bf16.xpose.msra.mxu0 0
  %725 = vmatprep.subr.bf16.mxu0 0
  %726 = vmatpush2.bf16.xpose.msra.mxu0 0
  %727 = vmatprep.subr.bf16.mxu0 0
  %728 = vmatpush2.bf16.xpose.msra.mxu0 0
  %729 = vmatprep.subr.bf16.mxu0 0
  %730 = vmatpush2.bf16.xpose.msra.mxu0 0
  %731 = vmatprep.subr.bf16.mxu0 0
  %732 = vmatpush2.bf16.xpose.msra.mxu0 0
  %733 = vmatprep.subr.bf16.mxu0 0
  %734 = vmatpush2.bf16.xpose.msra.mxu0 0
  %735 = vmatprep.subr.bf16.mxu0 0
  %736 = vmatpush2.bf16.xpose.msra.mxu0 0
  %737 = vmatprep.subr.bf16.mxu0 0
  %738 = vmatpush2.bf16.xpose.msra.mxu0 0
  %739 = vmatprep.mubr.bf16.mxu0 0
  %740 = vmatmul.mubr.bf16.gmra.mxu0 %v702
  %v741 = vpop.f32.mrf.mxu0
  %v742 = vadd.f32 0.0, %v741
  %v743 = vpop.f32.mrf.mxu0
  %v744 = vpop.f32.mrf.mxu0
  %v745 = vpop.f32.mrf.mxu0
  %746 = vdwg.mxu0
  %v748 = vsel %vm608, %v349, 0
  %v751 = vsel %vm608, %v698, 0
  %753 = vmatprep.subr.bf16.mxu0 0
  %754 = vmatpush1.bf16.xpose.msra.mxu0 0
  %755 = vmatprep.subr.bf16.mxu0 0
  %756 = vmatpush1.bf16.xpose.msra.mxu0 0
  %757 = vmatprep.subr.bf16.mxu0 0
  %758 = vmatpush1.bf16.xpose.msra.mxu0 0
  %759 = vmatprep.subr.bf16.mxu0 0
  %760 = vmatpush1.bf16.xpose.msra.mxu0 0
  %761 = vmatprep.subr.bf16.mxu0 0
  %762 = vmatpush1.bf16.xpose.msra.mxu0 0
  %763 = vmatprep.subr.bf16.mxu0 0
  %764 = vmatpush1.bf16.xpose.msra.mxu0 0
  %765 = vmatprep.subr.bf16.mxu0 0
  %766 = vmatpush1.bf16.xpose.msra.mxu0 0
  %767 = vmatprep.subr.bf16.mxu0 0
  %768 = vmatpush1.bf16.xpose.msra.mxu0 %v751
  %769 = vmatprep.subr.bf16.mxu0 0
  %770 = vmatpush2.bf16.xpose.msra.mxu0 0
  %771 = vmatprep.subr.bf16.mxu0 0
  %772 = vmatpush2.bf16.xpose.msra.mxu0 0
  %773 = vmatprep.subr.bf16.mxu0 0
  %774 = vmatpush2.bf16.xpose.msra.mxu0 0
  %775 = vmatprep.subr.bf16.mxu0 0
  %776 = vmatpush2.bf16.xpose.msra.mxu0 0
  %777 = vmatprep.subr.bf16.mxu0 0
  %778 = vmatpush2.bf16.xpose.msra.mxu0 0
  %779 = vmatprep.subr.bf16.mxu0 0
  %780 = vmatpush2.bf16.xpose.msra.mxu0 0
  %781 = vmatprep.subr.bf16.mxu0 0
  %782 = vmatpush2.bf16.xpose.msra.mxu0 0
  %783 = vmatprep.subr.bf16.mxu0 0
  %784 = vmatpush2.bf16.xpose.msra.mxu0 0
  %785 = vmatprep.mubr.bf16.mxu0 0
  %786 = vmatmul.mubr.bf16.gmra.mxu0 %v748
  %v787 = vpop.f32.mrf.mxu0
  %v788 = vadd.f32 0.0, %v787
  %v789 = vpop.f32.mrf.mxu0
  %v790 = vpop.f32.mrf.mxu0
  %v791 = vpop.f32.mrf.mxu0
  %792 = vdwg.mxu0
  %v794 = vsel %vm608, %v350, 0
  %v797 = vsel %vm608, %v699, 0
  %799 = vmatprep.subr.bf16.mxu0 0
  %800 = vmatpush1.bf16.xpose.msra.mxu0 0
  %801 = vmatprep.subr.bf16.mxu0 0
  %802 = vmatpush1.bf16.xpose.msra.mxu0 0
  %803 = vmatprep.subr.bf16.mxu0 0
  %804 = vmatpush1.bf16.xpose.msra.mxu0 0
  %805 = vmatprep.subr.bf16.mxu0 0
  %806 = vmatpush1.bf16.xpose.msra.mxu0 0
  %807 = vmatprep.subr.bf16.mxu0 0
  %808 = vmatpush1.bf16.xpose.msra.mxu0 0
  %809 = vmatprep.subr.bf16.mxu0 0
  %810 = vmatpush1.bf16.xpose.msra.mxu0 0
  %811 = vmatprep.subr.bf16.mxu0 0
  %812 = vmatpush1.bf16.xpose.msra.mxu0 0
  %813 = vmatprep.subr.bf16.mxu0 0
  %814 = vmatpush1.bf16.xpose.msra.mxu0 %v797
  %815 = vmatprep.subr.bf16.mxu0 0
  %816 = vmatpush2.bf16.xpose.msra.mxu0 0
  %817 = vmatprep.subr.bf16.mxu0 0
  %818 = vmatpush2.bf16.xpose.msra.mxu0 0
  %819 = vmatprep.subr.bf16.mxu0 0
  %820 = vmatpush2.bf16.xpose.msra.mxu0 0
  %821 = vmatprep.subr.bf16.mxu0 0
  %822 = vmatpush2.bf16.xpose.msra.mxu0 0
  %823 = vmatprep.subr.bf16.mxu0 0
  %824 = vmatpush2.bf16.xpose.msra.mxu0 0
  %825 = vmatprep.subr.bf16.mxu0 0
  %826 = vmatpush2.bf16.xpose.msra.mxu0 0
  %827 = vmatprep.subr.bf16.mxu0 0
  %828 = vmatpush2.bf16.xpose.msra.mxu0 0
  %829 = vmatprep.subr.bf16.mxu0 0
  %830 = vmatpush2.bf16.xpose.msra.mxu0 0
  %831 = vmatprep.mubr.bf16.mxu0 0
  %832 = vmatmul.mubr.bf16.gmra.mxu0 %v794
  %v833 = vpop.f32.mrf.mxu0
  %v834 = vadd.f32 0.0, %v833
  %v835 = vpop.f32.mrf.mxu0
  %v836 = vpop.f32.mrf.mxu0
  %v837 = vpop.f32.mrf.mxu0
  %838 = vdwg.mxu0
  %v840 = vsel %vm608, %v351, 0
  %v843 = vsel %vm608, %v700, 0
  %845 = vmatprep.subr.bf16.mxu0 0
  %846 = vmatpush1.bf16.xpose.msra.mxu0 0
  %847 = vmatprep.subr.bf16.mxu0 0
  %848 = vmatpush1.bf16.xpose.msra.mxu0 0
  %849 = vmatprep.subr.bf16.mxu0 0
  %850 = vmatpush1.bf16.xpose.msra.mxu0 0
  %851 = vmatprep.subr.bf16.mxu0 0
  %852 = vmatpush1.bf16.xpose.msra.mxu0 0
  %853 = vmatprep.subr.bf16.mxu0 0
  %854 = vmatpush1.bf16.xpose.msra.mxu0 0
  %855 = vmatprep.subr.bf16.mxu0 0
  %856 = vmatpush1.bf16.xpose.msra.mxu0 0
  %857 = vmatprep.subr.bf16.mxu0 0
  %858 = vmatpush1.bf16.xpose.msra.mxu0 0
  %859 = vmatprep.subr.bf16.mxu0 0
  %860 = vmatpush1.bf16.xpose.msra.mxu0 %v843
  %861 = vmatprep.subr.bf16.mxu0 0
  %862 = vmatpush2.bf16.xpose.msra.mxu0 0
  %863 = vmatprep.subr.bf16.mxu0 0
  %864 = vmatpush2.bf16.xpose.msra.mxu0 0
  %865 = vmatprep.subr.bf16.mxu0 0
  %866 = vmatpush2.bf16.xpose.msra.mxu0 0
  %867 = vmatprep.subr.bf16.mxu0 0
  %868 = vmatpush2.bf16.xpose.msra.mxu0 0
  %869 = vmatprep.subr.bf16.mxu0 0
  %870 = vmatpush2.bf16.xpose.msra.mxu0 0
  %871 = vmatprep.subr.bf16.mxu0 0
  %872 = vmatpush2.bf16.xpose.msra.mxu0 0
  %873 = vmatprep.subr.bf16.mxu0 0
  %874 = vmatpush2.bf16.xpose.msra.mxu0 0
  %875 = vmatprep.subr.bf16.mxu0 0
  %876 = vmatpush2.bf16.xpose.msra.mxu0 0
  %877 = vmatprep.mubr.bf16.mxu0 0
  %878 = vmatmul.mubr.bf16.gmra.mxu0 %v840
  %v879 = vpop.f32.mrf.mxu0
  %v880 = vadd.f32 0.0, %v879
  %v881 = vpop.f32.mrf.mxu0
  %v882 = vpop.f32.mrf.mxu0
  %v883 = vpop.f32.mrf.mxu0
  %884 = vdwg.mxu0
  %v885 = vpack.c.bf16 %v788, %v742
  %v886 = vpack.c.bf16 %v880, %v834
  %v887 = vld [vmem:[%s10] sm:$0xf]
  %v888 = vld [vmem:[%s10 + $0x4] sm:$0xf]
  %v889 = vld [vmem:[%s10 + $0x8] sm:$0xf]
  %v890 = vld [vmem:[%s10 + $0xc] sm:$0xf]
  %v891 = vld [vmem:[%s11] sm:$0xff]
  %v892 = vld [vmem:[%s11 + $0x8] sm:$0xff]
  %v893 = vld [vmem:[%s11 + $0x10] sm:$0xff]
  %v894 = vld [vmem:[%s11 + $0x18] sm:$0xff]
  %896 = vset.pattern.permute.xlu0 0
  %897 = vperm.xlu0 %896, %v891
  %v898 = vpop.permute.xlu0 %897
  %901 = vset.pattern.permute.xlu0 0
  %902 = vperm.xlu0 %901, %v892
  %v903 = vpop.permute.xlu0 %902
  %906 = vset.pattern.permute.xlu0 0
  %907 = vperm.xlu0 %906, %v893
  %v908 = vpop.permute.xlu0 %907
  %911 = vset.pattern.permute.xlu0 0
  %912 = vperm.xlu0 %911, %v894
  %v913 = vpop.permute.xlu0 %912
  %v919 = vunpack.c.l.b16 %v887
  %v920 = vunpack.c.l.b16 %v888
  %v921 = vunpack.c.l.b16 %v889
  %v922 = vunpack.c.l.b16 %v890
  %v923 = vpack.c.b16 %v920, %v919
  %v924 = vpack.c.b16 %v922, %v921
  %v926 = vsel %vm98, %v923, 0
  %v929 = vsel %vm98, %v924, 0
  %931 = vmatprep.subr.bf16.mxu0 0
  %932 = vmatpush1.bf16.msra.mxu0 0
  %933 = vmatprep.subr.bf16.mxu0 0
  %934 = vmatpush1.bf16.msra.mxu0 0
  %935 = vmatprep.subr.bf16.mxu0 0
  %936 = vmatpush1.bf16.msra.mxu0 0
  %937 = vmatprep.subr.bf16.mxu0 0
  %938 = vmatpush1.bf16.msra.mxu0 0
  %939 = vmatprep.subr.bf16.mxu0 0
  %940 = vmatpush1.bf16.msra.mxu0 0
  %941 = vmatprep.subr.bf16.mxu0 0
  %942 = vmatpush1.bf16.msra.mxu0 0
  %943 = vmatprep.subr.bf16.mxu0 0
  %944 = vmatpush1.bf16.msra.mxu0 %v886
  %945 = vmatprep.subr.bf16.mxu0 0
  %946 = vmatpush1.bf16.msra.mxu0 %v885
  %947 = vmatprep.subr.bf16.mxu0 0
  %948 = vmatpush2.bf16.msra.mxu0 0
  %949 = vmatprep.subr.bf16.mxu0 0
  %950 = vmatpush2.bf16.msra.mxu0 0
  %951 = vmatprep.subr.bf16.mxu0 0
  %952 = vmatpush2.bf16.msra.mxu0 0
  %953 = vmatprep.subr.bf16.mxu0 0
  %954 = vmatpush2.bf16.msra.mxu0 0
  %955 = vmatprep.subr.bf16.mxu0 0
  %956 = vmatpush2.bf16.msra.mxu0 0
  %957 = vmatprep.subr.bf16.mxu0 0
  %958 = vmatpush2.bf16.msra.mxu0 0
  %959 = vmatprep.subr.bf16.mxu0 0
  %960 = vmatpush2.bf16.msra.mxu0 0
  %961 = vmatprep.subr.bf16.mxu0 0
  %962 = vmatpush2.bf16.msra.mxu0 0
  %963 = vmatprep.mubr.bf16.mxu0 0
  %964 = vmatmul.mubr.bf16.gmra.mxu0 %v926
  %v965 = vpop.f32.mrf.mxu0
  %v966 = vadd.f32 %v898, %v965
  %v967 = vpop.f32.mrf.mxu0
  %v968 = vpop.f32.mrf.mxu0
  %v969 = vadd.f32 %v903, %v968
  %v970 = vpop.f32.mrf.mxu0
  %971 = vmatprep.mubr.bf16.mxu0 0
  %972 = vmatmul.mubr.bf16.gmra.mxu0 %v929
  %v973 = vpop.f32.mrf.mxu0
  %v974 = vadd.f32 %v908, %v973
  %v975 = vpop.f32.mrf.mxu0
  %v976 = vpop.f32.mrf.mxu0
  %v977 = vadd.f32 %v913, %v976
  %v978 = vpop.f32.mrf.mxu0
  %979 = vdwg.mxu0
  %980 = vst.msk [vmem:[%s12] sm:$0xff] %vm608, %v966
  %981 = vst.msk [vmem:[%s12 + $0x8] sm:$0xff] %vm608, %v969
  %982 = vst.msk [vmem:[%s12 + $0x10] sm:$0xff] %vm608, %v974
  %983 = vst.msk [vmem:[%s12 + $0x18] sm:$0xff] %vm608, %v977
  // Predicated region
  $region50: #{tpu_custom_call.1} parent=0 // pred_check
    _
  $region51: #{tpu_custom_call.1} parent=0 // pred_check_branch
    %985 = sbr.rel (0) target = $region53
  $region52: #{tpu_custom_call.1} parent=0 // pred_region
    _
  $region53: #{tpu_custom_call.1} parent=0 // pred_fallthru
    _
  // Predicated region
  $region54: #{tpu_custom_call.1} parent=0 // pred_check
    _
  $region55: #{tpu_custom_call.1} parent=0 // pred_check_branch
    %987 = sbr.rel (0) target = $region57
  $region56: #{tpu_custom_call.1} parent=0 // pred_region
    _
  $region57: #{tpu_custom_call.1} parent=0 // pred_fallthru
    _

</llo_original>
